<compile_context>
chip_gen: v6e
topology: v6e:2x2x1
jax: 0.10.0
libtpu: 0.0.40
codegen_flags: <defaults>
</compile_context>

<pallas_src>
import jax
import jax.numpy as jnp
from jax.experimental import pallas as pl
from jax.experimental.pallas import tpu as pltpu


def _cdiv(a, b):
    return -(-a // b)


def _round_up(a, b):
    return _cdiv(a, b) * b


def _encoder_kernel(f_ref, w_ref, o_ref):
    # f_ref: (1, K, tt)  bf16  tap-major input columns for this (batch, time tile)
    # w_ref: (H, K)      bf16  full filter bank (resident in VMEM across steps)
    # o_ref: (1, H, tt)  f32   output block, already in NCW layout (no transpose)
    o_ref[0] = jnp.dot(
        w_ref[...], f_ref[0], preferred_element_type=jnp.float32
    ).astype(o_ref.dtype)


def encoder_forward(x, weight, *, stride, padding, t_tile=1024,
                    compute_dtype=jnp.bfloat16):
    """Conv1d(1, H, L, stride, padding, bias=False) as one Pallas MXU matmul.

    x:      (B, 1, T) float32   (PyTorch NCW layout)
    weight: (H, 1, L) float32   (PyTorch Conv1d OIW layout)
    returns (B, H, T_out) float32
    """
    B, c_in, T = x.shape
    assert c_in == 1, "Encoder uses a single input channel"
    H, _, L = weight.shape
    s = int(stride)
    assert s >= 1 and L >= 1

    T_out = (T + 2 * padding - L) // s + 1
    assert T_out >= 1, "input too short for this kernel_size/stride/padding"

    G = _cdiv(L, s)            # stride-frames touched by one conv window
    s_pad = _round_up(s, 8)    # sublane-friendly tap-group width
    K = G * s_pad              # matmul contraction size

    # ---- time tiling: lane-dense (multiple of 128), balanced across tiles ---
    tt = min(_round_up(T_out, 128), _round_up(t_tile, 128))
    n_t = _cdiv(T_out, tt)
    tt = _round_up(_cdiv(T_out, n_t), 128)
    n_t = _cdiv(T_out, tt)
    T_pad = n_t * tt           # padded number of output frames (>= T_out)

    # ---- build tap-major input F_all (B, K, T_pad) with NO gather -----------
    n_frames = T_pad + G - 1
    P = n_frames * s
    x1 = x[:, 0, :].astype(compute_dtype)                          # (B, T)
    right = max(P - T - padding, 0)
    xp = jnp.pad(x1, ((0, 0), (padding, right)))[:, :P]            # (B, P)
    framesT = xp.reshape(B, n_frames, s).transpose(0, 2, 1)        # (B, s, nF)
    framesT = jnp.pad(framesT, ((0, 0), (0, s_pad - s), (0, 0)))   # (B, s_pad, nF)
    f_all = jnp.concatenate(
        [framesT[:, :, g:g + T_pad] for g in range(G)], axis=1)    # (B, K, T_pad)

    # ---- weight groups -> (H, K); taps beyond L and pad rows are zero -------
    w2 = weight[:, 0, :].astype(compute_dtype)                     # (H, L)
    w2 = jnp.pad(w2, ((0, 0), (0, G * s - L)))                     # (H, G*s)
    w_all = jnp.pad(w2.reshape(H, G, s),
                    ((0, 0), (0, 0), (0, s_pad - s))).reshape(H, K)

    # ---- hot path: one lane-dense MXU matmul per (batch, time tile) ---------
    out = pl.pallas_call(
        _encoder_kernel,
        out_shape=jax.ShapeDtypeStruct((B, H, T_out), jnp.float32),
        grid_spec=pltpu.PrefetchScalarGridSpec(
            num_scalar_prefetch=0,
            grid=(B, n_t),
            in_specs=[
                pl.BlockSpec((1, K, tt), lambda b, j: (b, 0, j)),  # input columns
                pl.BlockSpec((H, K), lambda b, j: (0, 0)),         # filter bank
            ],
            out_specs=pl.BlockSpec((1, H, tt), lambda b, j: (b, 0, j)),
        ),
        compiler_params=pltpu.CompilerParams(
            dimension_semantics=("parallel", "parallel")),
    )(f_all, w_all)
    return out


if __name__ == "__main__":
    # Default hyper-params of the PyTorch module:
    #   L = 40000 // 1000 = 40, H = 256, stride = L//2 = 20, padding = (L-1)//2 = 19
    L = 40
    H = 256
    stride = L // 2
    padding = (L - 1) // 2

    B = 2
    T = 2560                     # 64 ms of 40 kHz audio; T_out = (2560+38-40)//20+1 = 128
    T_out = (T + 2 * padding - L) // stride + 1

    key = jax.random.PRNGKey(0)
    kx, kw = jax.random.split(key)
    x = jax.random.normal(kx, (B, 1, T), dtype=jnp.float32)
    # Deterministic synthetic Conv1d weight, PyTorch layout (H, 1, L).
    weight = jax.random.normal(kw, (H, 1, L), dtype=jnp.float32) * (1.0 / L) ** 0.5

    fwd = jax.jit(lambda xx, ww: encoder_forward(xx, ww, stride=stride, padding=padding))
    out = jax.block_until_ready(fwd(x, weight))
    assert out.shape == (B, H, T_out), out.shape

    # Reference 1: identical semantics with the same bf16-rounded inputs,
    # f32 math (apples-to-apples with the bf16-input / f32-accumulate kernel).
    x_r = x.astype(jnp.bfloat16).astype(jnp.float32)
    w_r = weight.astype(jnp.bfloat16).astype(jnp.float32)
    ref = jax.lax.conv_general_dilated(
        x_r, w_r,
        window_strides=(stride,),
        padding=[(padding, padding)],
        dimension_numbers=("NCH", "OIH", "NCH"),
        precision=jax.lax.Precision.HIGHEST,
    )
    ref = jax.block_until_ready(ref)
    err = float(jnp.max(jnp.abs(out - ref)))
    assert jnp.allclose(out, ref, atol=2e-3, rtol=2e-3), err

    # Reference 2 (sanity): pure-f32 conv; only bf16 input rounding differs.
    ref_f32 = jax.lax.conv_general_dilated(
        x, weight,
        window_strides=(stride,),
        padding=[(padding, padding)],
        dimension_numbers=("NCH", "OIH", "NCH"),
        precision=jax.lax.Precision.HIGHEST,
    )
    err32 = float(jnp.max(jnp.abs(out - ref_f32)))
    assert jnp.allclose(out, ref_f32, atol=1e-1, rtol=0.0), err32

    print("KERNEL_OK")
</pallas_src>

<mosaic_0001>
module attributes {stable_mosaic.version = 11 : i64} {
  func.func @_encoder_kernel(%arg0: i32, %arg1: i32, %arg2: memref<1x48x128xbf16, #tpu.memory_space<vmem>>, %arg3: memref<256x48xbf16, #tpu.memory_space<vmem>>, %arg4: memref<1x256x128xf32, #tpu.memory_space<vmem>>) attributes {dimension_semantics = [#tpu.dimension_semantics<parallel>, #tpu.dimension_semantics<parallel>], iteration_bounds = array<i64: 2, 1>, scalar_prefetch = 0 : i64, scratch_operands = 0 : i64, tpu.core_type = #tpu.core_type<tc>, window_params = [{transform_indices = @transform_0, window_bounds = array<i64: 1, 48, 128>}, {pipeline_mode = #tpu.pipeline_mode<synchronous>, transform_indices = @transform_1, window_bounds = array<i64: 256, 48>}, {transform_indices = @transform_2, window_bounds = array<i64: 1, 256, 128>}]} {
    %c0 = arith.constant 0 : index
    %c0_0 = arith.constant 0 : index
    %0 = vector.load %arg3[%c0, %c0_0] : memref<256x48xbf16, #tpu.memory_space<vmem>>, vector<256x48xbf16>
    %c0_1 = arith.constant 0 : index
    %c0_2 = arith.constant 0 : index
    %c0_3 = arith.constant 0 : index
    %1 = vector.load %arg2[%c0_1, %c0_2, %c0_3] : memref<1x48x128xbf16, #tpu.memory_space<vmem>>, vector<1x48x128xbf16>
    %2 = vector.shape_cast %1 : vector<1x48x128xbf16> to vector<48x128xbf16>
    %cst = arith.constant dense<0.000000e+00> : vector<256x128xf32>
    %3 = tpu.matmul %0, %2, %cst {dimension_numbers = #tpu.dot_dimension_numbers<[1], [0], [0], [1], [0, 0, 1, 1], [], []>} : vector<256x48xbf16>, vector<48x128xbf16>, vector<256x128xf32> -> vector<256x128xf32>
    %c0_4 = arith.constant 0 : index
    %c0_5 = arith.constant 0 : index
    %c0_6 = arith.constant 0 : index
    %4 = vector.load %arg4[%c0_4, %c0_5, %c0_6] : memref<1x256x128xf32, #tpu.memory_space<vmem>>, vector<1x256x128xf32>
    %5 = vector.shape_cast %4 : vector<1x256x128xf32> to vector<256x128xf32>
    %6 = vector.shape_cast %3 : vector<256x128xf32> to vector<1x256x128xf32>
    tpu.vector_store %arg4[%c0_4, %c0_5, %c0_6], %6 {strides = array<i32>} : memref<1x256x128xf32, #tpu.memory_space<vmem>>, vector<1x256x128xf32>,
    return
  }
  func.func @transform_0(%arg0: i32, %arg1: i32) -> (i32, i32, i32) {
    %c0_i32 = arith.constant 0 : i32
    %c0_i32_0 = arith.constant 0 : i32
    return %arg0, %c0_i32, %arg1 : i32, i32, i32
  }
  func.func @transform_1(%arg0: i32, %arg1: i32) -> (i32, i32) {
    %c0_i32 = arith.constant 0 : i32
    %c0_i32_0 = arith.constant 0 : i32
    %c0_i32_1 = arith.constant 0 : i32
    return %c0_i32, %c0_i32_0 : i32, i32
  }
  func.func @transform_2(%arg0: i32, %arg1: i32) -> (i32, i32, i32) {
    %c0_i32 = arith.constant 0 : i32
    %c0_i32_0 = arith.constant 0 : i32
    return %arg0, %c0_i32, %arg1 : i32, i32, i32
  }
}

</mosaic_0001>

<llo_original>
// kernel: _lambda_.1
$region0: #{_lambda_.1}
  #allocation0 [shape = 'u32[]', space=smem, size = 0x4, offset = 0x4, fixed_abs, tag = 'smem constant byte address 0x4 - core index']
  #allocation1 [shape = 'u32[144,128]{1,0:T(1,128)}', space=vmem, size = 0x12000, scoped, tag = 'internal scratch']
  %s0 = inlined_call_operand.vmem [shape: bf16[2,48,128], index: 0, kind: input, shape index: {}]
  %s1 = inlined_call_operand.vmem [shape: bf16[256,48], index: 1, kind: input, shape index: {}]
  %s2 = inlined_call_operand.hbm [shape: f32[2,256,128], index: 2, kind: output, shape index: {}]
  %s3 = sld [smem:[#allocation0]]
  $region41: #{_lambda_.1} parent=0
    _
  %s5 = ssub.s32 1, %s3
  %s6 = scalar_select 0, %s5, %s3
  $region1: #{_lambda_.1} parent=0
    #allocation2 [shape = 'u8[262144]{0}', space=vmem, size = 0x40000, scoped, tag = 'output window, operand 0']
    #allocation3 [shape = 's32[2]{0}', space=sflag, size = 0x8, scoped, tag = 'scoped memory for _lambda_.1']
    %7 = vsyncpa [#allocation3], 0
    %s8 = scalar_lea.sflag [#allocation3], 1
    %9 = vsyncpa %s8, 0
    loop: start=0, step=1, limit=4
    $region2: #{_lambda_.1} parent=1 // loop_pre_header
      _
    $region3: #{_lambda_.1} parent=1 // loop_header
      %s11 = sphi 0, %s15
      %p12 = scmp.ge.s32.totalorder %s11, 4
      %s18 = sphi 0, %s30
      %s19 = sphi 0, %s26
      %s20 = sphi 0, %s18
      %s21 = sphi 0, %s19
      %s22 = sphi 0, %s20
      %s23 = sphi 0, %s21
      %s35 = sphi 0, %s37
      %s38 = sphi 0, %s35
      %s39 = sphi 0, %s38
      %s55 = sphi 0, %s39
      %s59 = sphi 0, %s59
      %s61 = sphi 0, %s59
      %s62 = sphi 0, %s61
      %s76 = sphi 0, %s62
      %s84 = sphi 0, %s86
      %s87 = sphi 0, %s84
      %s88 = sphi 0, %s87
      %s104 = sphi 0, %s88
    $region4: #{_lambda_.1} parent=1 // loop_header_branch
      %14 = sbr.rel (%p12) target = $region8
    $region5: #{_lambda_.1} parent=1 // loop_body
      %s16 = ssub.s32 %s11, 1
      %s17 = ssub.s32 %s11, 2
      %s24 = sadd.s32 1, %s19
      %p25 = scmp.ge.s32.totalorder %s24, 1
      %s26 = scalar_select %p25, 0, %s24
      %s27 = sadd.s32 1, %s18
      %s28 = scalar_select %p25, %s27, %s18
      %p29 = scmp.ge.s32.totalorder %s28, 2
      %s30 = scalar_select %p29, 0, %s28
      %s31 = ssub.s32 %s18, %s30
      %s32 = ssub.s32 %s19, %s26
      %s33 = sor.u32 %s31, %s32
      %p34 = scmp.eq.s32.totalorder %s33, 0
      %s36 = sadd.s32 %s35, 1
      %s37 = scalar_select %p34, %s35, %s36
      %p40 = pneg %p34
      %p41 = scmp.eq.s32.totalorder %s11, 1
      %p42 = por %p40, %p41
      %p43 = scmp.ne.s32.totalorder %s35, %s38
      %p44 = scmp.eq.s32.totalorder %s11, 0
      %p45 = por %p43, %p44
      %p46 = scmp.ne.s32.totalorder %s35, %s38
      %p47 = scmp.eq.s32.totalorder %s16, 1
      %p48 = por %p46, %p47
      %p49 = scmp.ne.s32.totalorder %s38, %s39
      %p50 = scmp.eq.s32.totalorder %s16, 0
      %p51 = por %p49, %p50
      %p52 = scmp.ne.s32.totalorder %s38, %s39
      %p53 = scmp.eq.s32.totalorder %s17, 1
      %p54 = por %p52, %p53
      %p56 = scmp.ne.s32.totalorder %s39, %s55
      %p57 = scmp.eq.s32.totalorder %s17, 0
      %p58 = por %p56, %p57
      %s60 = sadd.s32 %s59, 1
      %p63 = scmp.eq.s32.totalorder %s11, 1
      %p64 = scmp.ne.s32.totalorder %s59, %s61
      %p65 = scmp.eq.s32.totalorder %s11, 0
      %p66 = por %p64, %p65
      %p67 = scmp.ne.s32.totalorder %s59, %s61
      %p68 = scmp.eq.s32.totalorder %s16, 1
      %p69 = por %p67, %p68
      %p70 = scmp.ne.s32.totalorder %s61, %s62
      %p71 = scmp.eq.s32.totalorder %s16, 0
      %p72 = por %p70, %p71
      %p73 = scmp.ne.s32.totalorder %s61, %s62
      %p74 = scmp.eq.s32.totalorder %s17, 1
      %p75 = por %p73, %p74
      %p77 = scmp.ne.s32.totalorder %s62, %s76
      %p78 = scmp.eq.s32.totalorder %s17, 0
      %p79 = por %p77, %p78
      %s80 = ssub.s32 %s18, %s30
      %s81 = ssub.s32 %s19, %s26
      %s82 = sor.u32 %s80, %s81
      %p83 = scmp.eq.s32.totalorder %s82, 0
      %s85 = sadd.s32 %s84, 1
      %s86 = scalar_select %p83, %s84, %s85
      %p89 = pneg %p83
      %p90 = scmp.eq.s32.totalorder %s11, 1
      %p91 = por %p89, %p90
      %p92 = scmp.ne.s32.totalorder %s84, %s87
      %p93 = scmp.eq.s32.totalorder %s11, 0
      %p94 = por %p92, %p93
      %p95 = scmp.ne.s32.totalorder %s84, %s87
      %p96 = scmp.eq.s32.totalorder %s16, 1
      %p97 = por %p95, %p96
      %p98 = scmp.ne.s32.totalorder %s87, %s88
      %p99 = scmp.eq.s32.totalorder %s16, 0
      %p100 = por %p98, %p99
      %p101 = scmp.ne.s32.totalorder %s87, %s88
      %p102 = scmp.eq.s32.totalorder %s17, 1
      %p103 = por %p101, %p102
      %p105 = scmp.ne.s32.totalorder %s88, %s104
      %p106 = scmp.eq.s32.totalorder %s17, 0
      %p107 = por %p105, %p106
      %p108 = scmp.le.s32.totalorder 1, %s11
      %p109 = scmp.lt.s32.totalorder %s11, 3
      %p110 = pnand %p108, %p109
      %p111 = pneg %p110
      // Predicated region
      $region9: #{_lambda_.1} parent=5 // pred_check
        _
      $region10: #{_lambda_.1} parent=5 // pred_check_branch
        %113 = sbr.rel (%p110) target = $region12
      $region11: #{_lambda_.1} parent=5 // pred_region
        %s114 = ssub.s32 %s11, 1
        // Predicated region
        $region13: #{_lambda_.1} parent=11 // pred_check
          %p115 = pneg %p72
        $region14: #{_lambda_.1} parent=11 // pred_check_branch
          %117 = sbr.rel (%p115) target = $region16
        $region15: #{_lambda_.1} parent=11 // pred_region
          _
        $region16: #{_lambda_.1} parent=11 // pred_fallthru
          _
      $region12: #{_lambda_.1} parent=5 // pred_fallthru
        _
      %p118 = scmp.lt.s32.totalorder %s11, 2
      // Predicated region
      $region17: #{_lambda_.1} parent=5 // pred_check
        %p119 = pneg %p118
      $region18: #{_lambda_.1} parent=5 // pred_check_branch
        %121 = sbr.rel (%p119) target = $region20
      $region19: #{_lambda_.1} parent=5 // pred_region
        // Predicated region
        $region21: #{_lambda_.1} parent=19 // pred_check
          %p122 = pneg %p45
        $region22: #{_lambda_.1} parent=19 // pred_check_branch
          %124 = sbr.rel (%p122) target = $region24
        $region23: #{_lambda_.1} parent=19 // pred_region
          %p125 = scmp.lt.s32.totalorder %s18, 1
          %s126 = scalar_select %p125, %s18, 1
          %p127 = scmp.lt.s32.totalorder %s19, 0
          %s128 = scalar_select %p127, %s19, 0
          %s129 = smul.addr %s126, 6
          %s130 = sadd.s32 %s128, %s129
          %s131 = smul.addr %s130, 4
          %s132 = scalar_lea.vmem %s0, %s131
        $region24: #{_lambda_.1} parent=19 // pred_fallthru
          _
      $region20: #{_lambda_.1} parent=5 // pred_fallthru
        _
      %p133 = scmp.le.s32.totalorder 1, %s11
      %p134 = scmp.lt.s32.totalorder %s11, 3
      %p135 = pnand %p133, %p134
      %p136 = pneg %p135
      // Predicated region
      $region25: #{_lambda_.1} parent=5 // pred_check
        _
      $region26: #{_lambda_.1} parent=5 // pred_check_branch
        %138 = sbr.rel (%p135) target = $region28
      $region27: #{_lambda_.1} parent=5 // pred_region
        %s139 = ssub.s32 %s11, 1
        %p140 = scmp.lt.s32.totalorder %s20, 1
        %s141 = scalar_select %p140, %s20, 1
        %p142 = scmp.lt.s32.totalorder %s21, 0
        %s143 = scalar_select %p142, %s21, 0
        %s144 = smul.addr %s141, 6
        %s145 = sadd.s32 %s143, %s144
        %s146 = smul.addr %s145, 4
        %s147 = scalar_lea.vmem %s0, %s146
        %p148 = pneg %p51
        %p149 = pneg %p48
        %p150 = pneg %p72
        %p151 = pneg %p69
        %p152 = pneg %p100
        %p153 = pneg %p97
        %s154 = sand.u32 %s87, 1
        %s155 = scalar_lea.sflag [#allocation3], %s154
        %s156 = sand.u32 %s87, 1
        %s157 = smul.addr %s156, 256
        %s158 = scalar_lea.vmem [#allocation2], %s157
        %p159 = scmp.lt.s32.totalorder %s20, 1
        %s160 = scalar_select %p159, %s20, 1
        %p161 = scmp.lt.s32.totalorder %s21, 0
        %s162 = scalar_select %p161, %s21, 0
        %s163 = smul.addr %s160, 6
        %s164 = sadd.s32 %s162, %s163
        %s165 = smul.addr %s164, 4
        %s166 = scalar_lea.vmem %s0, %s165
        %v168 = vld [vmem:[%s1] sm:$0xf]
        %v169 = vld [vmem:[%s1 + $0x4] sm:$0xf]
        %v170 = vld [vmem:[%s1 + $0x8] sm:$0xf]
        %v171 = vld [vmem:[%s1 + $0xc] sm:$0xf]
        %v172 = vld [vmem:[%s1 + $0x10] sm:$0xf]
        %v173 = vld [vmem:[%s1 + $0x14] sm:$0xf]
        %v174 = vld [vmem:[%s1 + $0x18] sm:$0xf]
        %v175 = vld [vmem:[%s1 + $0x1c] sm:$0xf]
        %v176 = vld [vmem:[%s1 + $0x20] sm:$0xf]
        %v177 = vld [vmem:[%s1 + $0x24] sm:$0xf]
        %v178 = vld [vmem:[%s1 + $0x28] sm:$0xf]
        %v179 = vld [vmem:[%s1 + $0x2c] sm:$0xf]
        %v180 = vld [vmem:[%s1 + $0x30] sm:$0xf]
        %v181 = vld [vmem:[%s1 + $0x34] sm:$0xf]
        %v182 = vld [vmem:[%s1 + $0x38] sm:$0xf]
        %v183 = vld [vmem:[%s1 + $0x3c] sm:$0xf]
        %v184 = vld [vmem:[%s1 + $0x40] sm:$0xf]
        %v185 = vld [vmem:[%s1 + $0x44] sm:$0xf]
        %v186 = vld [vmem:[%s1 + $0x48] sm:$0xf]
        %v187 = vld [vmem:[%s1 + $0x4c] sm:$0xf]
        %v188 = vld [vmem:[%s1 + $0x50] sm:$0xf]
        %v189 = vld [vmem:[%s1 + $0x54] sm:$0xf]
        %v190 = vld [vmem:[%s1 + $0x58] sm:$0xf]
        %v191 = vld [vmem:[%s1 + $0x5c] sm:$0xf]
        %v192 = vld [vmem:[%s1 + $0x60] sm:$0xf]
        %v193 = vld [vmem:[%s1 + $0x64] sm:$0xf]
        %v194 = vld [vmem:[%s1 + $0x68] sm:$0xf]
        %v195 = vld [vmem:[%s1 + $0x6c] sm:$0xf]
        %v196 = vld [vmem:[%s1 + $0x70] sm:$0xf]
        %v197 = vld [vmem:[%s1 + $0x74] sm:$0xf]
        %v198 = vld [vmem:[%s1 + $0x78] sm:$0xf]
        %v199 = vld [vmem:[%s1 + $0x7c] sm:$0xf]
        %v200 = vld [vmem:[%s166] sm:$0xf]
        %v201 = vld [vmem:[%s166 + $0x4] sm:$0xf]
        %v202 = vld [vmem:[%s166 + $0x8] sm:$0xf]
        %v203 = vld [vmem:[%s166 + $0xc] sm:$0xf]
        %v204 = vld [vmem:[%s166 + $0x10] sm:$0xf]
        %v205 = vld [vmem:[%s166 + $0x14] sm:$0xf]
        %v238 = vunpack.c.l.b16 %v168
        %v239 = vunpack.c.l.b16 %v169
        %v240 = vunpack.c.l.b16 %v170
        %v241 = vunpack.c.l.b16 %v171
        %v242 = vunpack.c.l.b16 %v172
        %v243 = vunpack.c.l.b16 %v173
        %v244 = vunpack.c.l.b16 %v174
        %v245 = vunpack.c.l.b16 %v175
        %v246 = vunpack.c.l.b16 %v176
        %v247 = vunpack.c.l.b16 %v177
        %v248 = vunpack.c.l.b16 %v178
        %v249 = vunpack.c.l.b16 %v179
        %v250 = vunpack.c.l.b16 %v180
        %v251 = vunpack.c.l.b16 %v181
        %v252 = vunpack.c.l.b16 %v182
        %v253 = vunpack.c.l.b16 %v183
        %v254 = vunpack.c.l.b16 %v184
        %v255 = vunpack.c.l.b16 %v185
        %v256 = vunpack.c.l.b16 %v186
        %v257 = vunpack.c.l.b16 %v187
        %v258 = vunpack.c.l.b16 %v188
        %v259 = vunpack.c.l.b16 %v189
        %v260 = vunpack.c.l.b16 %v190
        %v261 = vunpack.c.l.b16 %v191
        %v262 = vunpack.c.l.b16 %v192
        %v263 = vunpack.c.l.b16 %v193
        %v264 = vunpack.c.l.b16 %v194
        %v265 = vunpack.c.l.b16 %v195
        %v266 = vunpack.c.l.b16 %v196
        %v267 = vunpack.c.l.b16 %v197
        %v268 = vunpack.c.l.b16 %v198
        %v269 = vunpack.c.l.b16 %v199
        %v270 = vpack.c.b16 %v239, %v238
        %v271 = vpack.c.b16 %v241, %v240
        %v272 = vpack.c.b16 %v243, %v242
        %v273 = vpack.c.b16 %v245, %v244
        %v274 = vpack.c.b16 %v247, %v246
        %v275 = vpack.c.b16 %v249, %v248
        %v276 = vpack.c.b16 %v251, %v250
        %v277 = vpack.c.b16 %v253, %v252
        %v278 = vpack.c.b16 %v255, %v254
        %v279 = vpack.c.b16 %v257, %v256
        %v280 = vpack.c.b16 %v259, %v258
        %v281 = vpack.c.b16 %v261, %v260
        %v282 = vpack.c.b16 %v263, %v262
        %v283 = vpack.c.b16 %v265, %v264
        %v284 = vpack.c.b16 %v267, %v266
        %v285 = vpack.c.b16 %v269, %v268
        %v292 = vunpack.c.l.b16 %v200
        %v293 = vunpack.c.l.b16 %v201
        %v294 = vunpack.c.l.b16 %v202
        %v295 = vunpack.c.l.b16 %v203
        %v296 = vunpack.c.l.b16 %v204
        %v297 = vunpack.c.l.b16 %v205
        %v298 = vpack.c.b16 %v293, %v292
        %v299 = vpack.c.b16 %v295, %v294
        %v300 = vpack.c.b16 %v297, %v296
        %vm304 = vcmask 392192
        %v306 = vsel %vm304, %v270, 0
        %v309 = vsel %vm304, %v271, 0
        %v312 = vsel %vm304, %v272, 0
        %v315 = vsel %vm304, %v273, 0
        %v318 = vsel %vm304, %v274, 0
        %v321 = vsel %vm304, %v275, 0
        %v324 = vsel %vm304, %v276, 0
        %v327 = vsel %vm304, %v277, 0
        %v330 = vsel %vm304, %v278, 0
        %v333 = vsel %vm304, %v279, 0
        %v336 = vsel %vm304, %v280, 0
        %v339 = vsel %vm304, %v281, 0
        %v342 = vsel %vm304, %v282, 0
        %v345 = vsel %vm304, %v283, 0
        %v348 = vsel %vm304, %v284, 0
        %v351 = vsel %vm304, %v285, 0
        %353 = vmatprep.subr.bf16.mxu0 0
        %354 = vmatpush1.bf16.msra.mxu0 0
        %355 = vmatprep.subr.bf16.mxu0 0
        %356 = vmatpush1.bf16.msra.mxu0 0
        %357 = vmatprep.subr.bf16.mxu0 0
        %358 = vmatpush1.bf16.msra.mxu0 0
        %359 = vmatprep.subr.bf16.mxu0 0
        %360 = vmatpush1.bf16.msra.mxu0 0
        %361 = vmatprep.subr.bf16.mxu0 0
        %362 = vmatpush1.bf16.msra.mxu0 0
        %363 = vmatprep.subr.bf16.mxu0 0
        %364 = vmatpush1.bf16.msra.mxu0 %v300
        %365 = vmatprep.subr.bf16.mxu0 0
        %366 = vmatpush1.bf16.msra.mxu0 %v299
        %367 = vmatprep.subr.bf16.mxu0 0
        %368 = vmatpush1.bf16.msra.mxu0 %v298
        %369 = vmatprep.subr.bf16.mxu0 0
        %370 = vmatpush2.bf16.msra.mxu0 0
        %371 = vmatprep.subr.bf16.mxu0 0
        %372 = vmatpush2.bf16.msra.mxu0 0
        %373 = vmatprep.subr.bf16.mxu0 0
        %374 = vmatpush2.bf16.msra.mxu0 0
        %375 = vmatprep.subr.bf16.mxu0 0
        %376 = vmatpush2.bf16.msra.mxu0 0
        %377 = vmatprep.subr.bf16.mxu0 0
        %378 = vmatpush2.bf16.msra.mxu0 0
        %379 = vmatprep.subr.bf16.mxu0 0
        %380 = vmatpush2.bf16.msra.mxu0 0
        %381 = vmatprep.subr.bf16.mxu0 0
        %382 = vmatpush2.bf16.msra.mxu0 0
        %383 = vmatprep.subr.bf16.mxu0 0
        %384 = vmatpush2.bf16.msra.mxu0 0
        %385 = vmatprep.mubr.bf16.mxu0 0
        %386 = vmatmul.mubr.bf16.gmra.mxu0 %v306
        %v387 = vpop.f32.mrf.mxu0
        %v388 = vadd.f32 0.0, %v387
        %v389 = vpop.f32.mrf.mxu0
        %v390 = vpop.f32.mrf.mxu0
        %v391 = vadd.f32 0.0, %v390
        %v392 = vpop.f32.mrf.mxu0
        %393 = vmatprep.mubr.bf16.mxu0 0
        %394 = vmatmul.mubr.bf16.gmra.mxu0 %v309
        %v395 = vpop.f32.mrf.mxu0
        %v396 = vadd.f32 0.0, %v395
        %v397 = vpop.f32.mrf.mxu0
        %v398 = vpop.f32.mrf.mxu0
        %v399 = vadd.f32 0.0, %v398
        %v400 = vpop.f32.mrf.mxu0
        %401 = vmatprep.mubr.bf16.mxu0 0
        %402 = vmatmul.mubr.bf16.gmra.mxu0 %v312
        %v403 = vpop.f32.mrf.mxu0
        %v404 = vadd.f32 0.0, %v403
        %v405 = vpop.f32.mrf.mxu0
        %v406 = vpop.f32.mrf.mxu0
        %v407 = vadd.f32 0.0, %v406
        %v408 = vpop.f32.mrf.mxu0
        %409 = vmatprep.mubr.bf16.mxu0 0
        %410 = vmatmul.mubr.bf16.gmra.mxu0 %v315
        %v411 = vpop.f32.mrf.mxu0
        %v412 = vadd.f32 0.0, %v411
        %v413 = vpop.f32.mrf.mxu0
        %v414 = vpop.f32.mrf.mxu0
        %v415 = vadd.f32 0.0, %v414
        %v416 = vpop.f32.mrf.mxu0
        %417 = vmatprep.mubr.bf16.mxu0 0
        %418 = vmatmul.mubr.bf16.gmra.mxu0 %v318
        %v419 = vpop.f32.mrf.mxu0
        %v420 = vadd.f32 0.0, %v419
        %v421 = vpop.f32.mrf.mxu0
        %v422 = vpop.f32.mrf.mxu0
        %v423 = vadd.f32 0.0, %v422
        %v424 = vpop.f32.mrf.mxu0
        %425 = vmatprep.mubr.bf16.mxu0 0
        %426 = vmatmul.mubr.bf16.gmra.mxu0 %v321
        %v427 = vpop.f32.mrf.mxu0
        %v428 = vadd.f32 0.0, %v427
        %v429 = vpop.f32.mrf.mxu0
        %v430 = vpop.f32.mrf.mxu0
        %v431 = vadd.f32 0.0, %v430
        %v432 = vpop.f32.mrf.mxu0
        %433 = vmatprep.mubr.bf16.mxu0 0
        %434 = vmatmul.mubr.bf16.gmra.mxu0 %v324
        %v435 = vpop.f32.mrf.mxu0
        %v436 = vadd.f32 0.0, %v435
        %v437 = vpop.f32.mrf.mxu0
        %v438 = vpop.f32.mrf.mxu0
        %v439 = vadd.f32 0.0, %v438
        %v440 = vpop.f32.mrf.mxu0
        %441 = vmatprep.mubr.bf16.mxu0 0
        %442 = vmatmul.mubr.bf16.gmra.mxu0 %v327
        %v443 = vpop.f32.mrf.mxu0
        %v444 = vadd.f32 0.0, %v443
        %v445 = vpop.f32.mrf.mxu0
        %v446 = vpop.f32.mrf.mxu0
        %v447 = vadd.f32 0.0, %v446
        %v448 = vpop.f32.mrf.mxu0
        %449 = vmatprep.mubr.bf16.mxu0 0
        %450 = vmatmul.mubr.bf16.gmra.mxu0 %v330
        %v451 = vpop.f32.mrf.mxu0
        %v452 = vadd.f32 0.0, %v451
        %v453 = vpop.f32.mrf.mxu0
        %v454 = vpop.f32.mrf.mxu0
        %v455 = vadd.f32 0.0, %v454
        %v456 = vpop.f32.mrf.mxu0
        %457 = vmatprep.mubr.bf16.mxu0 0
        %458 = vmatmul.mubr.bf16.gmra.mxu0 %v333
        %v459 = vpop.f32.mrf.mxu0
        %v460 = vadd.f32 0.0, %v459
        %v461 = vpop.f32.mrf.mxu0
        %v462 = vpop.f32.mrf.mxu0
        %v463 = vadd.f32 0.0, %v462
        %v464 = vpop.f32.mrf.mxu0
        %465 = vmatprep.mubr.bf16.mxu0 0
        %466 = vmatmul.mubr.bf16.gmra.mxu0 %v336
        %v467 = vpop.f32.mrf.mxu0
        %v468 = vadd.f32 0.0, %v467
        %v469 = vpop.f32.mrf.mxu0
        %v470 = vpop.f32.mrf.mxu0
        %v471 = vadd.f32 0.0, %v470
        %v472 = vpop.f32.mrf.mxu0
        %473 = vmatprep.mubr.bf16.mxu0 0
        %474 = vmatmul.mubr.bf16.gmra.mxu0 %v339
        %v475 = vpop.f32.mrf.mxu0
        %v476 = vadd.f32 0.0, %v475
        %v477 = vpop.f32.mrf.mxu0
        %v478 = vpop.f32.mrf.mxu0
        %v479 = vadd.f32 0.0, %v478
        %v480 = vpop.f32.mrf.mxu0
        %481 = vmatprep.mubr.bf16.mxu0 0
        %482 = vmatmul.mubr.bf16.gmra.mxu0 %v342
        %v483 = vpop.f32.mrf.mxu0
        %v484 = vadd.f32 0.0, %v483
        %v485 = vpop.f32.mrf.mxu0
        %v486 = vpop.f32.mrf.mxu0
        %v487 = vadd.f32 0.0, %v486
        %v488 = vpop.f32.mrf.mxu0
        %489 = vmatprep.mubr.bf16.mxu0 0
        %490 = vmatmul.mubr.bf16.gmra.mxu0 %v345
        %v491 = vpop.f32.mrf.mxu0
        %v492 = vadd.f32 0.0, %v491
        %v493 = vpop.f32.mrf.mxu0
        %v494 = vpop.f32.mrf.mxu0
        %v495 = vadd.f32 0.0, %v494
        %v496 = vpop.f32.mrf.mxu0
        %497 = vmatprep.mubr.bf16.mxu0 0
        %498 = vmatmul.mubr.bf16.gmra.mxu0 %v348
        %v499 = vpop.f32.mrf.mxu0
        %v500 = vadd.f32 0.0, %v499
        %v501 = vpop.f32.mrf.mxu0
        %v502 = vpop.f32.mrf.mxu0
        %v503 = vadd.f32 0.0, %v502
        %v504 = vpop.f32.mrf.mxu0
        %505 = vmatprep.mubr.bf16.mxu0 0
        %506 = vmatmul.mubr.bf16.gmra.mxu0 %v351
        %v507 = vpop.f32.mrf.mxu0
        %v508 = vadd.f32 0.0, %v507
        %v509 = vpop.f32.mrf.mxu0
        %v510 = vpop.f32.mrf.mxu0
        %v511 = vadd.f32 0.0, %v510
        %v512 = vpop.f32.mrf.mxu0
        %513 = vdwg.mxu0
        %514 = vst [vmem:[%s158] sm:$0xff] %v388
        %515 = vst [vmem:[%s158 + $0x8] sm:$0xff] %v391
        %516 = vst [vmem:[%s158 + $0x10] sm:$0xff] %v396
        %517 = vst [vmem:[%s158 + $0x18] sm:$0xff] %v399
        %518 = vst [vmem:[%s158 + $0x20] sm:$0xff] %v404
        %519 = vst [vmem:[%s158 + $0x28] sm:$0xff] %v407
        %520 = vst [vmem:[%s158 + $0x30] sm:$0xff] %v412
        %521 = vst [vmem:[%s158 + $0x38] sm:$0xff] %v415
        %522 = vst [vmem:[%s158 + $0x40] sm:$0xff] %v420
        %523 = vst [vmem:[%s158 + $0x48] sm:$0xff] %v423
        %524 = vst [vmem:[%s158 + $0x50] sm:$0xff] %v428
        %525 = vst [vmem:[%s158 + $0x58] sm:$0xff] %v431
        %526 = vst [vmem:[%s158 + $0x60] sm:$0xff] %v436
        %527 = vst [vmem:[%s158 + $0x68] sm:$0xff] %v439
        %528 = vst [vmem:[%s158 + $0x70] sm:$0xff] %v444
        %529 = vst [vmem:[%s158 + $0x78] sm:$0xff] %v447
        %530 = vst [vmem:[%s158 + $0x80] sm:$0xff] %v452
        %531 = vst [vmem:[%s158 + $0x88] sm:$0xff] %v455
        %532 = vst [vmem:[%s158 + $0x90] sm:$0xff] %v460
        %533 = vst [vmem:[%s158 + $0x98] sm:$0xff] %v463
        %534 = vst [vmem:[%s158 + $0xa0] sm:$0xff] %v468
        %535 = vst [vmem:[%s158 + $0xa8] sm:$0xff] %v471
        %536 = vst [vmem:[%s158 + $0xb0] sm:$0xff] %v476
        %537 = vst [vmem:[%s158 + $0xb8] sm:$0xff] %v479
        %538 = vst [vmem:[%s158 + $0xc0] sm:$0xff] %v484
        %539 = vst [vmem:[%s158 + $0xc8] sm:$0xff] %v487
        %540 = vst [vmem:[%s158 + $0xd0] sm:$0xff] %v492
        %541 = vst [vmem:[%s158 + $0xd8] sm:$0xff] %v495
        %542 = vst [vmem:[%s158 + $0xe0] sm:$0xff] %v500
        %543 = vst [vmem:[%s158 + $0xe8] sm:$0xff] %v503
        %544 = vst [vmem:[%s158 + $0xf0] sm:$0xff] %v508
        %545 = vst [vmem:[%s158 + $0xf8] sm:$0xff] %v511
        %s546 = sand.u32 %s87, 1
        %s547 = scalar_lea.sflag [#allocation3], %s546
        %s548 = sand.u32 %s87, 1
        %s549 = smul.addr %s548, 256
        %s550 = scalar_lea.vmem [#allocation2], %s549
        // Predicated region
        $region29: #{_lambda_.1} parent=27 // pred_check
          %p551 = pneg %p97
        $region30: #{_lambda_.1} parent=27 // pred_check_branch
          %553 = sbr.rel (%p551) target = $region32
        $region31: #{_lambda_.1} parent=27 // pred_region
          %s555 = ssub.s32 4096, 4096
          %556 = vsyncadd %s547, %s555
          %s557 = smul.addr %s20, 32
          %s558 = sadd.s32 %s21, %s557
          %s559 = smul.addr %s558, 128
          %s560 = scalar_lea.hbm %s2, %s559
          %s561 = sshll.u32 %s550, 4
          %s562 = int_to_ptr.vmem [resolvable:$true] %s561
          %567 = dma.vmem_to_hbm [thread:$0]  %s562, 4096, %s560, %s547, 128, 128, 8
        $region32: #{_lambda_.1} parent=27 // pred_fallthru
          _
      $region28: #{_lambda_.1} parent=5 // pred_fallthru
        _
      %p568 = scmp.le.s32.totalorder 2, %s11
      // Predicated region
      $region33: #{_lambda_.1} parent=5 // pred_check
        %p569 = pneg %p568
      $region34: #{_lambda_.1} parent=5 // pred_check_branch
        %571 = sbr.rel (%p569) target = $region36
      $region35: #{_lambda_.1} parent=5 // pred_region
        %s572 = ssub.s32 %s11, 2
        // Predicated region
        $region37: #{_lambda_.1} parent=35 // pred_check
          %p573 = pneg %p103
        $region38: #{_lambda_.1} parent=35 // pred_check_branch
          %575 = sbr.rel (%p573) target = $region40
        $region39: #{_lambda_.1} parent=35 // pred_region
          %s576 = sand.u32 %s88, 1
          %s577 = scalar_lea.sflag [#allocation3], %s576
          %s578 = sand.u32 %s88, 1
          %s579 = smul.addr %s578, 256
          %s580 = scalar_lea.vmem [#allocation2], %s579
          %581 = dma.done %s577, 4096
        $region40: #{_lambda_.1} parent=35 // pred_fallthru
          _
      $region36: #{_lambda_.1} parent=5 // pred_fallthru
        _
    $region6: #{_lambda_.1} parent=1 // loop_footer
      %s15 = sadd.s32 1, %s11
    $region7: #{_lambda_.1} parent=1 // loop_footer_branch
      %10 = sbr.rel target = $region3
    $region8: #{_lambda_.1} parent=1 // loop_exit
      _
    %582 = vsyncpa [#allocation3], 1
    %s583 = scalar_lea.sflag [#allocation3], 1
    %584 = vsyncpa %s583, 1

</llo_original>
